<compile_context>
chip_gen: v5e
topology: v5e:2x2
jax: 0.10.0
libtpu: 0.0.40
codegen_flags: <defaults>
</compile_context>

<pallas_src>
import functools

import jax
import jax.numpy as jnp
from jax.experimental import pallas as pl
from jax.experimental.pallas import tpu as pltpu
import numpy as np


def embed_kernel(x_ref, mask_ref, wih_ref, whh_ref, b_ref,
                 w1_ref, b1_ref, w2_ref, b2_ref, out_ref, gx_ref, *, n_valid):
    """x_ref: (T, B, E) time-major embedded input (one batch block)
       mask_ref: (B, max_sent_len)  1.0 where t < seq_len[b] else 0.0
       wih_ref: (E, 4H)  whh_ref: (H, 4H)  b_ref: (1, 4H) = b_ih + b_hh
       w1_ref: (1, H)  b1_ref: (1, 1)
       w2_ref: (max_sent_len, OUT_PAD)  b2_ref: (1, OUT_PAD) (zero-padded cols)
       out_ref: (B, OUT_PAD) lane-dense output slab
       gx_ref: (T*B, 4H) VMEM scratch for the hoisted input projection
       n_valid: true output_dim (static)."""
    T, B, E = x_ref.shape
    H = whh_ref.shape[0]
    MAX = mask_ref.shape[1]
    OUTP = out_ref.shape[1]

    # ---- hoisted, time-independent input projection: ONE MXU matmul --------
    # Staged in VMEM scratch so the statically unrolled recurrence does not
    # keep the whole (T*B, 4H) value live in vregs; per-step read below is a
    # free, sublane-aligned static slice.
    x2d = x_ref[...].reshape(T * B, E)                       # row = t*B + b
    gx_ref[...] = (jnp.dot(x2d, wih_ref[...],
                           preferred_element_type=jnp.float32)
                   + b_ref[...])                             # bias folded once

    whh = whh_ref[...]
    w1_b = jnp.broadcast_to(w1_ref[...], (B, H))             # hoisted broadcast
    col_iota = jax.lax.broadcasted_iota(jnp.int32, (1, MAX), 1)

    h = jnp.zeros((B, H), jnp.float32)
    c = jnp.zeros((B, H), jnp.float32)
    scores = jnp.zeros((B, MAX), jnp.float32)

    # static unroll of the LSTM recurrence (T is small and known at trace time)
    for t in range(T):
        # only the recurrent matmul remains on the serial per-step path
        gates = (gx_ref[t * B:(t + 1) * B, :]
                 + jnp.dot(h, whh, preferred_element_type=jnp.float32))  # (B,4H)
        sg = jax.nn.sigmoid(gates)        # one full-vreg EUP pass
        th = jnp.tanh(gates)              # one full-vreg EUP pass
        i = sg[:, 0 * H:1 * H]
        f = sg[:, 1 * H:2 * H]
        g = th[:, 2 * H:3 * H]
        o = sg[:, 3 * H:4 * H]
        c = f * c + i * g
        h = o * jnp.tanh(c)

        # fc1 contribution of column t: VPU multiply + lane reduce, accumulated
        # into a register row via a one-hot add. Not on the recurrence
        # dependency chain -> hides under the h @ W_hh latency. No stores.
        col = jnp.sum(h * w1_b, axis=1, keepdims=True)                    # (B,1)
        scores = scores + col * (col_iota == t).astype(jnp.float32)       # (B,MAX)

    # pad_packed_sequence zeros (mask), fc1 bias only on the first T columns
    # (ZeroPad2d columns T..MAX stay exactly zero), all applied once.
    valid_t = (col_iota < T).astype(jnp.float32)                          # (1,MAX)
    scores = scores * mask_ref[...] + b1_ref[...] * valid_t

    # fc2 + softmax. Output slab is lane-dense (OUTP multiple of 128); the
    # zero-padded columns are pushed to -1e30 so they contribute ~0 to the
    # softmax and the first n_valid columns are exact.
    logits = (jnp.dot(scores, w2_ref[...],
                      preferred_element_type=jnp.float32) + b2_ref[...])
    out_iota = jax.lax.broadcasted_iota(jnp.int32, (1, OUTP), 1)
    logits = jnp.where(out_iota < n_valid, logits, jnp.float32(-1e30))
    logits = logits - jnp.max(logits, axis=1, keepdims=True)
    e = jnp.exp(logits)
    out_ref[...] = e / jnp.sum(e, axis=1, keepdims=True)


def embed_forward(text, seq_len, params, max_sent_len, output_dim,
                  num_batch_blocks=1):
    """num_batch_blocks=1 (default) for single-TC v5e/v6e; use 2 on v7x when
    the padded batch is >= 16 so the 'parallel' grid axis shards one block per
    TensorCore."""
    B, T = text.shape
    E = params["embedding"].shape[1]
    H = E
    seq_len = jnp.clip(seq_len, 1, None)                         # seq_len.clamp(min=1)

    # Pad the int32 id matrix (tiny) -- NOT the embedded activations -- and
    # gather directly in time-major layout: (T, Bp, E). No extra HBM passes
    # over the (B, T, E) tensor.
    nb = max(1, int(num_batch_blocks))
    BT = ((-(-B // nb)) + 7) // 8 * 8                            # per-block rows, x8
    Bp = BT * nb
    pad = Bp - B
    text_p = jnp.pad(text, ((0, pad), (0, 0)))                   # dummy id 0
    seq_p = jnp.pad(seq_len, (0, pad), constant_values=1)

    x_tm = params["embedding"][text_p.T].astype(jnp.float32)     # (T, Bp, E)

    # mask at full max_sent_len width (cols >= T are 0 since seq <= T)
    mask = (jnp.arange(max_sent_len)[None, :] < seq_p[:, None]).astype(jnp.float32)

    # Lane-dense output slab: pad output_dim up to a multiple of 128.
    OUT_PAD = ((output_dim + 127) // 128) * 128

    wih_t = params["w_ih"].T.astype(jnp.float32)                 # (E, 4H)
    whh_t = params["w_hh"].T.astype(jnp.float32)                 # (H, 4H)
    bias = (params["b_ih"] + params["b_hh"])[None, :].astype(jnp.float32)  # (1, 4H)
    w1 = params["fc1_w"].astype(jnp.float32)                     # (1, H)
    b1 = params["fc1_b"].reshape(1, 1).astype(jnp.float32)       # (1, 1)
    w2_t = jnp.zeros((max_sent_len, OUT_PAD), jnp.float32)
    w2_t = w2_t.at[:, :output_dim].set(params["fc2_w"].T.astype(jnp.float32))
    b2 = jnp.zeros((1, OUT_PAD), jnp.float32)
    b2 = b2.at[:, :output_dim].set(params["fc2_b"].astype(jnp.float32))

    grid_spec = pltpu.PrefetchScalarGridSpec(
        num_scalar_prefetch=0,
        grid=(nb,),
        in_specs=[
            pl.BlockSpec((T, BT, E), lambda i: (0, i, 0)),               # x (time-major)
            pl.BlockSpec((BT, max_sent_len), lambda i: (i, 0)),          # mask
            pl.BlockSpec((E, 4 * H), lambda i: (0, 0)),                  # W_ih^T
            pl.BlockSpec((H, 4 * H), lambda i: (0, 0)),                  # W_hh^T
            pl.BlockSpec((1, 4 * H), lambda i: (0, 0)),                  # lstm bias
            pl.BlockSpec((1, H), lambda i: (0, 0)),                      # fc1 weight row
            pl.BlockSpec((1, 1), lambda i: (0, 0)),                      # fc1 bias
            pl.BlockSpec((max_sent_len, OUT_PAD), lambda i: (0, 0)),     # fc2 weight
            pl.BlockSpec((1, OUT_PAD), lambda i: (0, 0)),                # fc2 bias
        ],
        out_specs=pl.BlockSpec((BT, OUT_PAD), lambda i: (i, 0)),
        scratch_shapes=[pltpu.VMEM((T * BT, 4 * H), jnp.float32)],       # gates_x
    )
    out = pl.pallas_call(
        functools.partial(embed_kernel, n_valid=output_dim),
        out_shape=jax.ShapeDtypeStruct((Bp, OUT_PAD), jnp.float32),
        grid_spec=grid_spec,
        compiler_params=pltpu.CompilerParams(
            dimension_semantics=("parallel",)),
    )(x_tm, mask, wih_t, whh_t, bias, w1, b1, w2_t, b2)
    return out[:B, :output_dim]


def embed_reference(text, seq_len, params, max_sent_len, output_dim):
    """Pure-JAX reference mirroring the PyTorch forward."""
    emb = params["embedding"][text].astype(jnp.float32)
    B, T, E = emb.shape
    H = E
    seq_len = jnp.clip(seq_len, 1, None)
    h = jnp.zeros((B, H), jnp.float32)
    c = jnp.zeros((B, H), jnp.float32)
    outs = []
    for t in range(T):
        gates = (emb[:, t, :] @ params["w_ih"].T + params["b_ih"]
                 + h @ params["w_hh"].T + params["b_hh"])
        i = jax.nn.sigmoid(gates[:, :H])
        f = jax.nn.sigmoid(gates[:, H:2 * H])
        g = jnp.tanh(gates[:, 2 * H:3 * H])
        o = jax.nn.sigmoid(gates[:, 3 * H:])
        c = f * c + i * g
        h = o * jnp.tanh(c)
        outs.append(h)
    out = jnp.stack(outs, axis=1)                                # (B, T, H)
    mask = (jnp.arange(T)[None, :] < seq_len[:, None]).astype(jnp.float32)
    out = out * mask[:, :, None]                                 # pad_packed zeros
    y = out.reshape(B * T, H) @ params["fc1_w"].T + params["fc1_b"]
    y = y.reshape(B, T)
    y = jnp.pad(y, ((0, 0), (0, max_sent_len - T)))
    z = y @ params["fc2_w"].T + params["fc2_b"]
    return jax.nn.softmax(z, axis=1)


def init_params(key, vocab, embed_dim, max_sent_len, output_dim):
    H = embed_dim
    ks = jax.random.split(key, 8)
    scale = 1.0 / np.sqrt(H)
    return {
        "embedding": jax.random.normal(ks[0], (vocab, embed_dim), jnp.float32) * 0.1,
        "w_ih": jax.random.normal(ks[1], (4 * H, embed_dim), jnp.float32) * scale,
        "w_hh": jax.random.normal(ks[2], (4 * H, H), jnp.float32) * scale,
        "b_ih": jax.random.normal(ks[3], (4 * H,), jnp.float32) * scale,
        "b_hh": jax.random.normal(ks[4], (4 * H,), jnp.float32) * scale,
        "fc1_w": jax.random.normal(ks[5], (1, H), jnp.float32) * scale,
        "fc1_b": jnp.zeros((1,), jnp.float32) + 0.05,
        "fc2_w": jax.random.normal(ks[6], (output_dim, max_sent_len), jnp.float32) * 0.2,
        "fc2_b": jax.random.normal(ks[7], (output_dim,), jnp.float32) * 0.1,
    }


if __name__ == "__main__":
    B, T = 4, 8                 # batch, max_len (current batch's padded length)
    E = H = 32                  # embed_dim == hidden_size
    MAX_SENT_LEN = 12           # module's max_sent_len (>= T)
    OUTPUT_DIM = 6              # config output_dim
    VOCAB = 20

    key = jax.random.PRNGKey(0)
    kp, kt = jax.random.split(key)
    params = init_params(kp, VOCAB, E, MAX_SENT_LEN, OUTPUT_DIM)

    text = jax.random.randint(kt, (B, T), 0, VOCAB, dtype=jnp.int32)
    # pack_padded_sequence expects sorted-descending lengths, first == T
    seq_len = jnp.array([8, 6, 3, 1], dtype=jnp.int32)

    out = embed_forward(text, seq_len, params, MAX_SENT_LEN, OUTPUT_DIM)
    out = jax.block_until_ready(out)

    ref = embed_reference(text, seq_len, params, MAX_SENT_LEN, OUTPUT_DIM)
    np.testing.assert_allclose(np.asarray(out), np.asarray(ref),
                               rtol=1e-4, atol=1e-5)
    assert out.shape == (B, OUTPUT_DIM)
    np.testing.assert_allclose(np.asarray(out).sum(axis=1),
                               np.ones(B), rtol=1e-5, atol=1e-5)
    print("KERNEL_OK")
</pallas_src>

<mosaic_0001>
module attributes {stable_mosaic.version = 11 : i64} {
  func.func @embed_kernel(%arg0: i32, %arg1: memref<8x8x32xf32, #tpu.memory_space<vmem>>, %arg2: memref<8x12xf32, #tpu.memory_space<vmem>>, %arg3: memref<32x128xf32, #tpu.memory_space<vmem>>, %arg4: memref<32x128xf32, #tpu.memory_space<vmem>>, %arg5: memref<1x128xf32, #tpu.memory_space<vmem>>, %arg6: memref<1x32xf32, #tpu.memory_space<vmem>>, %arg7: memref<1x1xf32, #tpu.memory_space<vmem>>, %arg8: memref<12x128xf32, #tpu.memory_space<vmem>>, %arg9: memref<1x128xf32, #tpu.memory_space<vmem>>, %arg10: memref<8x128xf32, #tpu.memory_space<vmem>>, %arg11: memref<64x128xf32, #tpu.memory_space<vmem>>) attributes {dimension_semantics = [#tpu.dimension_semantics<parallel>], iteration_bounds = array<i64: 1>, scalar_prefetch = 0 : i64, scratch_operands = 1 : i64, tpu.core_type = #tpu.core_type<tc>, window_params = [{transform_indices = @transform_0, window_bounds = array<i64: 8, 8, 32>}, {transform_indices = @transform_1, window_bounds = array<i64: 8, 12>}, {pipeline_mode = #tpu.pipeline_mode<synchronous>, transform_indices = @transform_2, window_bounds = array<i64: 32, 128>}, {pipeline_mode = #tpu.pipeline_mode<synchronous>, transform_indices = @transform_3, window_bounds = array<i64: 32, 128>}, {pipeline_mode = #tpu.pipeline_mode<synchronous>, transform_indices = @transform_4, window_bounds = array<i64: 1, 128>}, {pipeline_mode = #tpu.pipeline_mode<synchronous>, transform_indices = @transform_5, window_bounds = array<i64: 1, 32>}, {pipeline_mode = #tpu.pipeline_mode<synchronous>, transform_indices = @transform_6, window_bounds = array<i64: 1, 1>}, {pipeline_mode = #tpu.pipeline_mode<synchronous>, transform_indices = @transform_7, window_bounds = array<i64: 12, 128>}, {pipeline_mode = #tpu.pipeline_mode<synchronous>, transform_indices = @transform_8, window_bounds = array<i64: 1, 128>}, {transform_indices = @transform_9, window_bounds = array<i64: 8, 128>}]} {
    %c0 = arith.constant 0 : index
    %c0_0 = arith.constant 0 : index
    %c0_1 = arith.constant 0 : index
    %0 = vector.load %arg1[%c0, %c0_0, %c0_1] : memref<8x8x32xf32, #tpu.memory_space<vmem>>, vector<8x8x32xf32>
    %1 = vector.shape_cast %0 : vector<8x8x32xf32> to vector<64x32xf32>
    %c0_2 = arith.constant 0 : index
    %c0_3 = arith.constant 0 : index
    %2 = vector.load %arg3[%c0_2, %c0_3] : memref<32x128xf32, #tpu.memory_space<vmem>>, vector<32x128xf32>
    %cst = arith.constant dense<0.000000e+00> : vector<64x128xf32>
    %3 = tpu.matmul %1, %2, %cst {dimension_numbers = #tpu.dot_dimension_numbers<[1], [0], [0], [1], [0, 0, 1, 1], [], []>} : vector<64x32xf32>, vector<32x128xf32>, vector<64x128xf32> -> vector<64x128xf32>
    %c0_4 = arith.constant 0 : index
    %c0_5 = arith.constant 0 : index
    %4 = vector.load %arg5[%c0_4, %c0_5] : memref<1x128xf32, #tpu.memory_space<vmem>>, vector<1x128xf32>
    %5 = vector.broadcast %4 : vector<1x128xf32> to vector<64x128xf32>
    %6 = arith.addf %3, %5 : vector<64x128xf32>
    %c0_6 = arith.constant 0 : index
    %c0_7 = arith.constant 0 : index
    %7 = vector.load %arg11[%c0_6, %c0_7] : memref<64x128xf32, #tpu.memory_space<vmem>>, vector<64x128xf32>
    tpu.vector_store %arg11[%c0_6, %c0_7], %6 {strides = array<i32>} : memref<64x128xf32, #tpu.memory_space<vmem>>, vector<64x128xf32>,
    %c0_8 = arith.constant 0 : index
    %c0_9 = arith.constant 0 : index
    %8 = vector.load %arg4[%c0_8, %c0_9] : memref<32x128xf32, #tpu.memory_space<vmem>>, vector<32x128xf32>
    %c0_10 = arith.constant 0 : index
    %c0_11 = arith.constant 0 : index
    %9 = vector.load %arg6[%c0_10, %c0_11] : memref<1x32xf32, #tpu.memory_space<vmem>>, vector<1x32xf32>
    %10 = vector.shape_cast %9 : vector<1x32xf32> to vector<1x32xf32>
    %11 = vector.broadcast %10 : vector<1x32xf32> to vector<8x32xf32>
    %12 = tpu.iota {dimensions = array<i32: 1>} : vector<1x12xi32>
    %cst_12 = arith.constant 0.000000e+00 : f32
    %13 = vector.broadcast %cst_12 : f32 to vector<8x32xf32>
    %cst_13 = arith.constant 0.000000e+00 : f32
    %14 = vector.broadcast %cst_13 : f32 to vector<8x32xf32>
    %cst_14 = arith.constant 0.000000e+00 : f32
    %15 = vector.broadcast %cst_14 : f32 to vector<8x12xf32>
    %c0_15 = arith.constant 0 : index
    %c0_16 = arith.constant 0 : index
    %16 = vector.load %arg11[%c0_15, %c0_16] : memref<64x128xf32, #tpu.memory_space<vmem>>, vector<8x128xf32>
    %cst_17 = arith.constant dense<0.000000e+00> : vector<8x128xf32>
    %17 = tpu.matmul %13, %8, %cst_17 {dimension_numbers = #tpu.dot_dimension_numbers<[1], [0], [0], [1], [0, 0, 1, 1], [], []>} : vector<8x32xf32>, vector<32x128xf32>, vector<8x128xf32> -> vector<8x128xf32>
    %18 = arith.addf %16, %17 : vector<8x128xf32>
    %19 = arith.negf %18 : vector<8x128xf32>
    %20 = math.exp %19 : vector<8x128xf32>
    %cst_18 = arith.constant 1.000000e+00 : f32
    %21 = vector.broadcast %cst_18 : f32 to vector<8x128xf32>
    %22 = arith.addf %21, %20 : vector<8x128xf32>
    %23 = arith.divf %21, %22 : vector<8x128xf32>
    %24 = math.tanh %18 : vector<8x128xf32>
    %25 = vector.extract_strided_slice %23 {offsets = [0, 0], sizes = [8, 32], strides = [1, 1]} : vector<8x128xf32> to vector<8x32xf32>
    %26 = vector.extract_strided_slice %23 {offsets = [0, 32], sizes = [8, 32], strides = [1, 1]} : vector<8x128xf32> to vector<8x32xf32>
    %27 = vector.extract_strided_slice %24 {offsets = [0, 64], sizes = [8, 32], strides = [1, 1]} : vector<8x128xf32> to vector<8x32xf32>
    %28 = vector.extract_strided_slice %23 {offsets = [0, 96], sizes = [8, 32], strides = [1, 1]} : vector<8x128xf32> to vector<8x32xf32>
    %29 = arith.mulf %26, %14 : vector<8x32xf32>
    %30 = arith.mulf %25, %27 : vector<8x32xf32>
    %31 = arith.addf %29, %30 : vector<8x32xf32>
    %32 = math.tanh %31 : vector<8x32xf32>
    %33 = arith.mulf %28, %32 : vector<8x32xf32>
    %34 = arith.mulf %33, %11 : vector<8x32xf32>
    %cst_19 = arith.constant dense<0.000000e+00> : vector<8xf32>
    %35 = vector.multi_reduction <add>, %34, %cst_19 [1] : vector<8x32xf32> to vector<8xf32>
    %36 = vector.shape_cast %35 : vector<8xf32> to vector<8x1xf32>
    %c0_i32 = arith.constant 0 : i32
    %37 = vector.broadcast %c0_i32 : i32 to vector<1x12xi32>
    %38 = arith.cmpi eq, %12, %37 : vector<1x12xi32>
    %39 = arith.extui %38 : vector<1x12xi1> to vector<1x12xi32>
    %40 = arith.sitofp %39 : vector<1x12xi32> to vector<1x12xf32>
    %41 = vector.broadcast %36 : vector<8x1xf32> to vector<8x12xf32>
    %42 = vector.broadcast %40 : vector<1x12xf32> to vector<8x12xf32>
    %43 = arith.mulf %41, %42 : vector<8x12xf32>
    %44 = arith.addf %15, %43 : vector<8x12xf32>
    %c8 = arith.constant 8 : index
    %c0_20 = arith.constant 0 : index
    %45 = vector.load %arg11[%c8, %c0_20] : memref<64x128xf32, #tpu.memory_space<vmem>>, vector<8x128xf32>
    %cst_21 = arith.constant dense<0.000000e+00> : vector<8x128xf32>
    %46 = tpu.matmul %33, %8, %cst_21 {dimension_numbers = #tpu.dot_dimension_numbers<[1], [0], [0], [1], [0, 0, 1, 1], [], []>} : vector<8x32xf32>, vector<32x128xf32>, vector<8x128xf32> -> vector<8x128xf32>
    %47 = arith.addf %45, %46 : vector<8x128xf32>
    %48 = arith.negf %47 : vector<8x128xf32>
    %49 = math.exp %48 : vector<8x128xf32>
    %cst_22 = arith.constant 1.000000e+00 : f32
    %50 = vector.broadcast %cst_22 : f32 to vector<8x128xf32>
    %51 = arith.addf %50, %49 : vector<8x128xf32>
    %52 = arith.divf %50, %51 : vector<8x128xf32>
    %53 = math.tanh %47 : vector<8x128xf32>
    %54 = vector.extract_strided_slice %52 {offsets = [0, 0], sizes = [8, 32], strides = [1, 1]} : vector<8x128xf32> to vector<8x32xf32>
    %55 = vector.extract_strided_slice %52 {offsets = [0, 32], sizes = [8, 32], strides = [1, 1]} : vector<8x128xf32> to vector<8x32xf32>
    %56 = vector.extract_strided_slice %53 {offsets = [0, 64], sizes = [8, 32], strides = [1, 1]} : vector<8x128xf32> to vector<8x32xf32>
    %57 = vector.extract_strided_slice %52 {offsets = [0, 96], sizes = [8, 32], strides = [1, 1]} : vector<8x128xf32> to vector<8x32xf32>
    %58 = arith.mulf %55, %31 : vector<8x32xf32>
    %59 = arith.mulf %54, %56 : vector<8x32xf32>
    %60 = arith.addf %58, %59 : vector<8x32xf32>
    %61 = math.tanh %60 : vector<8x32xf32>
    %62 = arith.mulf %57, %61 : vector<8x32xf32>
    %63 = arith.mulf %62, %11 : vector<8x32xf32>
    %cst_23 = arith.constant dense<0.000000e+00> : vector<8xf32>
    %64 = vector.multi_reduction <add>, %63, %cst_23 [1] : vector<8x32xf32> to vector<8xf32>
    %65 = vector.shape_cast %64 : vector<8xf32> to vector<8x1xf32>
    %c1_i32 = arith.constant 1 : i32
    %66 = vector.broadcast %c1_i32 : i32 to vector<1x12xi32>
    %67 = arith.cmpi eq, %12, %66 : vector<1x12xi32>
    %68 = arith.extui %67 : vector<1x12xi1> to vector<1x12xi32>
    %69 = arith.sitofp %68 : vector<1x12xi32> to vector<1x12xf32>
    %70 = vector.broadcast %65 : vector<8x1xf32> to vector<8x12xf32>
    %71 = vector.broadcast %69 : vector<1x12xf32> to vector<8x12xf32>
    %72 = arith.mulf %70, %71 : vector<8x12xf32>
    %73 = arith.addf %44, %72 : vector<8x12xf32>
    %c16 = arith.constant 16 : index
    %c0_24 = arith.constant 0 : index
    %74 = vector.load %arg11[%c16, %c0_24] : memref<64x128xf32, #tpu.memory_space<vmem>>, vector<8x128xf32>
    %cst_25 = arith.constant dense<0.000000e+00> : vector<8x128xf32>
    %75 = tpu.matmul %62, %8, %cst_25 {dimension_numbers = #tpu.dot_dimension_numbers<[1], [0], [0], [1], [0, 0, 1, 1], [], []>} : vector<8x32xf32>, vector<32x128xf32>, vector<8x128xf32> -> vector<8x128xf32>
    %76 = arith.addf %74, %75 : vector<8x128xf32>
    %77 = arith.negf %76 : vector<8x128xf32>
    %78 = math.exp %77 : vector<8x128xf32>
    %cst_26 = arith.constant 1.000000e+00 : f32
    %79 = vector.broadcast %cst_26 : f32 to vector<8x128xf32>
    %80 = arith.addf %79, %78 : vector<8x128xf32>
    %81 = arith.divf %79, %80 : vector<8x128xf32>
    %82 = math.tanh %76 : vector<8x128xf32>
    %83 = vector.extract_strided_slice %81 {offsets = [0, 0], sizes = [8, 32], strides = [1, 1]} : vector<8x128xf32> to vector<8x32xf32>
    %84 = vector.extract_strided_slice %81 {offsets = [0, 32], sizes = [8, 32], strides = [1, 1]} : vector<8x128xf32> to vector<8x32xf32>
    %85 = vector.extract_strided_slice %82 {offsets = [0, 64], sizes = [8, 32], strides = [1, 1]} : vector<8x128xf32> to vector<8x32xf32>
    %86 = vector.extract_strided_slice %81 {offsets = [0, 96], sizes = [8, 32], strides = [1, 1]} : vector<8x128xf32> to vector<8x32xf32>
    %87 = arith.mulf %84, %60 : vector<8x32xf32>
    %88 = arith.mulf %83, %85 : vector<8x32xf32>
    %89 = arith.addf %87, %88 : vector<8x32xf32>
    %90 = math.tanh %89 : vector<8x32xf32>
    %91 = arith.mulf %86, %90 : vector<8x32xf32>
    %92 = arith.mulf %91, %11 : vector<8x32xf32>
    %cst_27 = arith.constant dense<0.000000e+00> : vector<8xf32>
    %93 = vector.multi_reduction <add>, %92, %cst_27 [1] : vector<8x32xf32> to vector<8xf32>
    %94 = vector.shape_cast %93 : vector<8xf32> to vector<8x1xf32>
    %c2_i32 = arith.constant 2 : i32
    %95 = vector.broadcast %c2_i32 : i32 to vector<1x12xi32>
    %96 = arith.cmpi eq, %12, %95 : vector<1x12xi32>
    %97 = arith.extui %96 : vector<1x12xi1> to vector<1x12xi32>
    %98 = arith.sitofp %97 : vector<1x12xi32> to vector<1x12xf32>
    %99 = vector.broadcast %94 : vector<8x1xf32> to vector<8x12xf32>
    %100 = vector.broadcast %98 : vector<1x12xf32> to vector<8x12xf32>
    %101 = arith.mulf %99, %100 : vector<8x12xf32>
    %102 = arith.addf %73, %101 : vector<8x12xf32>
    %c24 = arith.constant 24 : index
    %c0_28 = arith.constant 0 : index
    %103 = vector.load %arg11[%c24, %c0_28] : memref<64x128xf32, #tpu.memory_space<vmem>>, vector<8x128xf32>
    %cst_29 = arith.constant dense<0.000000e+00> : vector<8x128xf32>
    %104 = tpu.matmul %91, %8, %cst_29 {dimension_numbers = #tpu.dot_dimension_numbers<[1], [0], [0], [1], [0, 0, 1, 1], [], []>} : vector<8x32xf32>, vector<32x128xf32>, vector<8x128xf32> -> vector<8x128xf32>
    %105 = arith.addf %103, %104 : vector<8x128xf32>
    %106 = arith.negf %105 : vector<8x128xf32>
    %107 = math.exp %106 : vector<8x128xf32>
    %cst_30 = arith.constant 1.000000e+00 : f32
    %108 = vector.broadcast %cst_30 : f32 to vector<8x128xf32>
    %109 = arith.addf %108, %107 : vector<8x128xf32>
    %110 = arith.divf %108, %109 : vector<8x128xf32>
    %111 = math.tanh %105 : vector<8x128xf32>
    %112 = vector.extract_strided_slice %110 {offsets = [0, 0], sizes = [8, 32], strides = [1, 1]} : vector<8x128xf32> to vector<8x32xf32>
    %113 = vector.extract_strided_slice %110 {offsets = [0, 32], sizes = [8, 32], strides = [1, 1]} : vector<8x128xf32> to vector<8x32xf32>
    %114 = vector.extract_strided_slice %111 {offsets = [0, 64], sizes = [8, 32], strides = [1, 1]} : vector<8x128xf32> to vector<8x32xf32>
    %115 = vector.extract_strided_slice %110 {offsets = [0, 96], sizes = [8, 32], strides = [1, 1]} : vector<8x128xf32> to vector<8x32xf32>
    %116 = arith.mulf %113, %89 : vector<8x32xf32>
    %117 = arith.mulf %112, %114 : vector<8x32xf32>
    %118 = arith.addf %116, %117 : vector<8x32xf32>
    %119 = math.tanh %118 : vector<8x32xf32>
    %120 = arith.mulf %115, %119 : vector<8x32xf32>
    %121 = arith.mulf %120, %11 : vector<8x32xf32>
    %cst_31 = arith.constant dense<0.000000e+00> : vector<8xf32>
    %122 = vector.multi_reduction <add>, %121, %cst_31 [1] : vector<8x32xf32> to vector<8xf32>
    %123 = vector.shape_cast %122 : vector<8xf32> to vector<8x1xf32>
    %c3_i32 = arith.constant 3 : i32
    %124 = vector.broadcast %c3_i32 : i32 to vector<1x12xi32>
    %125 = arith.cmpi eq, %12, %124 : vector<1x12xi32>
    %126 = arith.extui %125 : vector<1x12xi1> to vector<1x12xi32>
    %127 = arith.sitofp %126 : vector<1x12xi32> to vector<1x12xf32>
    %128 = vector.broadcast %123 : vector<8x1xf32> to vector<8x12xf32>
    %129 = vector.broadcast %127 : vector<1x12xf32> to vector<8x12xf32>
    %130 = arith.mulf %128, %129 : vector<8x12xf32>
    %131 = arith.addf %102, %130 : vector<8x12xf32>
    %c32 = arith.constant 32 : index
    %c0_32 = arith.constant 0 : index
    %132 = vector.load %arg11[%c32, %c0_32] : memref<64x128xf32, #tpu.memory_space<vmem>>, vector<8x128xf32>
    %cst_33 = arith.constant dense<0.000000e+00> : vector<8x128xf32>
    %133 = tpu.matmul %120, %8, %cst_33 {dimension_numbers = #tpu.dot_dimension_numbers<[1], [0], [0], [1], [0, 0, 1, 1], [], []>} : vector<8x32xf32>, vector<32x128xf32>, vector<8x128xf32> -> vector<8x128xf32>
    %134 = arith.addf %132, %133 : vector<8x128xf32>
    %135 = arith.negf %134 : vector<8x128xf32>
    %136 = math.exp %135 : vector<8x128xf32>
    %cst_34 = arith.constant 1.000000e+00 : f32
    %137 = vector.broadcast %cst_34 : f32 to vector<8x128xf32>
    %138 = arith.addf %137, %136 : vector<8x128xf32>
    %139 = arith.divf %137, %138 : vector<8x128xf32>
    %140 = math.tanh %134 : vector<8x128xf32>
    %141 = vector.extract_strided_slice %139 {offsets = [0, 0], sizes = [8, 32], strides = [1, 1]} : vector<8x128xf32> to vector<8x32xf32>
    %142 = vector.extract_strided_slice %139 {offsets = [0, 32], sizes = [8, 32], strides = [1, 1]} : vector<8x128xf32> to vector<8x32xf32>
    %143 = vector.extract_strided_slice %140 {offsets = [0, 64], sizes = [8, 32], strides = [1, 1]} : vector<8x128xf32> to vector<8x32xf32>
    %144 = vector.extract_strided_slice %139 {offsets = [0, 96], sizes = [8, 32], strides = [1, 1]} : vector<8x128xf32> to vector<8x32xf32>
    %145 = arith.mulf %142, %118 : vector<8x32xf32>
    %146 = arith.mulf %141, %143 : vector<8x32xf32>
    %147 = arith.addf %145, %146 : vector<8x32xf32>
    %148 = math.tanh %147 : vector<8x32xf32>
    %149 = arith.mulf %144, %148 : vector<8x32xf32>
    %150 = arith.mulf %149, %11 : vector<8x32xf32>
    %cst_35 = arith.constant dense<0.000000e+00> : vector<8xf32>
    %151 = vector.multi_reduction <add>, %150, %cst_35 [1] : vector<8x32xf32> to vector<8xf32>
    %152 = vector.shape_cast %151 : vector<8xf32> to vector<8x1xf32>
    %c4_i32 = arith.constant 4 : i32
    %153 = vector.broadcast %c4_i32 : i32 to vector<1x12xi32>
    %154 = arith.cmpi eq, %12, %153 : vector<1x12xi32>
    %155 = arith.extui %154 : vector<1x12xi1> to vector<1x12xi32>
    %156 = arith.sitofp %155 : vector<1x12xi32> to vector<1x12xf32>
    %157 = vector.broadcast %152 : vector<8x1xf32> to vector<8x12xf32>
    %158 = vector.broadcast %156 : vector<1x12xf32> to vector<8x12xf32>
    %159 = arith.mulf %157, %158 : vector<8x12xf32>
    %160 = arith.addf %131, %159 : vector<8x12xf32>
    %c40 = arith.constant 40 : index
    %c0_36 = arith.constant 0 : index
    %161 = vector.load %arg11[%c40, %c0_36] : memref<64x128xf32, #tpu.memory_space<vmem>>, vector<8x128xf32>
    %cst_37 = arith.constant dense<0.000000e+00> : vector<8x128xf32>
    %162 = tpu.matmul %149, %8, %cst_37 {dimension_numbers = #tpu.dot_dimension_numbers<[1], [0], [0], [1], [0, 0, 1, 1], [], []>} : vector<8x32xf32>, vector<32x128xf32>, vector<8x128xf32> -> vector<8x128xf32>
    %163 = arith.addf %161, %162 : vector<8x128xf32>
    %164 = arith.negf %163 : vector<8x128xf32>
    %165 = math.exp %164 : vector<8x128xf32>
    %cst_38 = arith.constant 1.000000e+00 : f32
    %166 = vector.broadcast %cst_38 : f32 to vector<8x128xf32>
    %167 = arith.addf %166, %165 : vector<8x128xf32>
    %168 = arith.divf %166, %167 : vector<8x128xf32>
    %169 = math.tanh %163 : vector<8x128xf32>
    %170 = vector.extract_strided_slice %168 {offsets = [0, 0], sizes = [8, 32], strides = [1, 1]} : vector<8x128xf32> to vector<8x32xf32>
    %171 = vector.extract_strided_slice %168 {offsets = [0, 32], sizes = [8, 32], strides = [1, 1]} : vector<8x128xf32> to vector<8x32xf32>
    %172 = vector.extract_strided_slice %169 {offsets = [0, 64], sizes = [8, 32], strides = [1, 1]} : vector<8x128xf32> to vector<8x32xf32>
    %173 = vector.extract_strided_slice %168 {offsets = [0, 96], sizes = [8, 32], strides = [1, 1]} : vector<8x128xf32> to vector<8x32xf32>
    %174 = arith.mulf %171, %147 : vector<8x32xf32>
    %175 = arith.mulf %170, %172 : vector<8x32xf32>
    %176 = arith.addf %174, %175 : vector<8x32xf32>
    %177 = math.tanh %176 : vector<8x32xf32>
    %178 = arith.mulf %173, %177 : vector<8x32xf32>
    %179 = arith.mulf %178, %11 : vector<8x32xf32>
    %cst_39 = arith.constant dense<0.000000e+00> : vector<8xf32>
    %180 = vector.multi_reduction <add>, %179, %cst_39 [1] : vector<8x32xf32> to vector<8xf32>
    %181 = vector.shape_cast %180 : vector<8xf32> to vector<8x1xf32>
    %c5_i32 = arith.constant 5 : i32
    %182 = vector.broadcast %c5_i32 : i32 to vector<1x12xi32>
    %183 = arith.cmpi eq, %12, %182 : vector<1x12xi32>
    %184 = arith.extui %183 : vector<1x12xi1> to vector<1x12xi32>
    %185 = arith.sitofp %184 : vector<1x12xi32> to vector<1x12xf32>
    %186 = vector.broadcast %181 : vector<8x1xf32> to vector<8x12xf32>
    %187 = vector.broadcast %185 : vector<1x12xf32> to vector<8x12xf32>
    %188 = arith.mulf %186, %187 : vector<8x12xf32>
    %189 = arith.addf %160, %188 : vector<8x12xf32>
    %c48 = arith.constant 48 : index
    %c0_40 = arith.constant 0 : index
    %190 = vector.load %arg11[%c48, %c0_40] : memref<64x128xf32, #tpu.memory_space<vmem>>, vector<8x128xf32>
    %cst_41 = arith.constant dense<0.000000e+00> : vector<8x128xf32>
    %191 = tpu.matmul %178, %8, %cst_41 {dimension_numbers = #tpu.dot_dimension_numbers<[1], [0], [0], [1], [0, 0, 1, 1], [], []>} : vector<8x32xf32>, vector<32x128xf32>, vector<8x128xf32> -> vector<8x128xf32>
    %192 = arith.addf %190, %191 : vector<8x128xf32>
    %193 = arith.negf %192 : vector<8x128xf32>
    %194 = math.exp %193 : vector<8x128xf32>
    %cst_42 = arith.constant 1.000000e+00 : f32
    %195 = vector.broadcast %cst_42 : f32 to vector<8x128xf32>
    %196 = arith.addf %195, %194 : vector<8x128xf32>
    %197 = arith.divf %195, %196 : vector<8x128xf32>
    %198 = math.tanh %192 : vector<8x128xf32>
    %199 = vector.extract_strided_slice %197 {offsets = [0, 0], sizes = [8, 32], strides = [1, 1]} : vector<8x128xf32> to vector<8x32xf32>
    %200 = vector.extract_strided_slice %197 {offsets = [0, 32], sizes = [8, 32], strides = [1, 1]} : vector<8x128xf32> to vector<8x32xf32>
    %201 = vector.extract_strided_slice %198 {offsets = [0, 64], sizes = [8, 32], strides = [1, 1]} : vector<8x128xf32> to vector<8x32xf32>
    %202 = vector.extract_strided_slice %197 {offsets = [0, 96], sizes = [8, 32], strides = [1, 1]} : vector<8x128xf32> to vector<8x32xf32>
    %203 = arith.mulf %200, %176 : vector<8x32xf32>
    %204 = arith.mulf %199, %201 : vector<8x32xf32>
    %205 = arith.addf %203, %204 : vector<8x32xf32>
    %206 = math.tanh %205 : vector<8x32xf32>
    %207 = arith.mulf %202, %206 : vector<8x32xf32>
    %208 = arith.mulf %207, %11 : vector<8x32xf32>
    %cst_43 = arith.constant dense<0.000000e+00> : vector<8xf32>
    %209 = vector.multi_reduction <add>, %208, %cst_43 [1] : vector<8x32xf32> to vector<8xf32>
    %210 = vector.shape_cast %209 : vector<8xf32> to vector<8x1xf32>
    %c6_i32 = arith.constant 6 : i32
    %211 = vector.broadcast %c6_i32 : i32 to vector<1x12xi32>
    %212 = arith.cmpi eq, %12, %211 : vector<1x12xi32>
    %213 = arith.extui %212 : vector<1x12xi1> to vector<1x12xi32>
    %214 = arith.sitofp %213 : vector<1x12xi32> to vector<1x12xf32>
    %215 = vector.broadcast %210 : vector<8x1xf32> to vector<8x12xf32>
    %216 = vector.broadcast %214 : vector<1x12xf32> to vector<8x12xf32>
    %217 = arith.mulf %215, %216 : vector<8x12xf32>
    %218 = arith.addf %189, %217 : vector<8x12xf32>
    %c56 = arith.constant 56 : index
    %c0_44 = arith.constant 0 : index
    %219 = vector.load %arg11[%c56, %c0_44] : memref<64x128xf32, #tpu.memory_space<vmem>>, vector<8x128xf32>
    %cst_45 = arith.constant dense<0.000000e+00> : vector<8x128xf32>
    %220 = tpu.matmul %207, %8, %cst_45 {dimension_numbers = #tpu.dot_dimension_numbers<[1], [0], [0], [1], [0, 0, 1, 1], [], []>} : vector<8x32xf32>, vector<32x128xf32>, vector<8x128xf32> -> vector<8x128xf32>
    %221 = arith.addf %219, %220 : vector<8x128xf32>
    %222 = arith.negf %221 : vector<8x128xf32>
    %223 = math.exp %222 : vector<8x128xf32>
    %cst_46 = arith.constant 1.000000e+00 : f32
    %224 = vector.broadcast %cst_46 : f32 to vector<8x128xf32>
    %225 = arith.addf %224, %223 : vector<8x128xf32>
    %226 = arith.divf %224, %225 : vector<8x128xf32>
    %227 = math.tanh %221 : vector<8x128xf32>
    %228 = vector.extract_strided_slice %226 {offsets = [0, 0], sizes = [8, 32], strides = [1, 1]} : vector<8x128xf32> to vector<8x32xf32>
    %229 = vector.extract_strided_slice %226 {offsets = [0, 32], sizes = [8, 32], strides = [1, 1]} : vector<8x128xf32> to vector<8x32xf32>
    %230 = vector.extract_strided_slice %227 {offsets = [0, 64], sizes = [8, 32], strides = [1, 1]} : vector<8x128xf32> to vector<8x32xf32>
    %231 = vector.extract_strided_slice %226 {offsets = [0, 96], sizes = [8, 32], strides = [1, 1]} : vector<8x128xf32> to vector<8x32xf32>
    %232 = arith.mulf %229, %205 : vector<8x32xf32>
    %233 = arith.mulf %228, %230 : vector<8x32xf32>
    %234 = arith.addf %232, %233 : vector<8x32xf32>
    %235 = math.tanh %234 : vector<8x32xf32>
    %236 = arith.mulf %231, %235 : vector<8x32xf32>
    %237 = arith.mulf %236, %11 : vector<8x32xf32>
    %cst_47 = arith.constant dense<0.000000e+00> : vector<8xf32>
    %238 = vector.multi_reduction <add>, %237, %cst_47 [1] : vector<8x32xf32> to vector<8xf32>
    %239 = vector.shape_cast %238 : vector<8xf32> to vector<8x1xf32>
    %c7_i32 = arith.constant 7 : i32
    %240 = vector.broadcast %c7_i32 : i32 to vector<1x12xi32>
    %241 = arith.cmpi eq, %12, %240 : vector<1x12xi32>
    %242 = arith.extui %241 : vector<1x12xi1> to vector<1x12xi32>
    %243 = arith.sitofp %242 : vector<1x12xi32> to vector<1x12xf32>
    %244 = vector.broadcast %239 : vector<8x1xf32> to vector<8x12xf32>
    %245 = vector.broadcast %243 : vector<1x12xf32> to vector<8x12xf32>
    %246 = arith.mulf %244, %245 : vector<8x12xf32>
    %247 = arith.addf %218, %246 : vector<8x12xf32>
    %c8_i32 = arith.constant 8 : i32
    %248 = vector.broadcast %c8_i32 : i32 to vector<1x12xi32>
    %249 = arith.cmpi slt, %12, %248 : vector<1x12xi32>
    %250 = arith.extui %249 : vector<1x12xi1> to vector<1x12xi32>
    %251 = arith.sitofp %250 : vector<1x12xi32> to vector<1x12xf32>
    %c0_48 = arith.constant 0 : index
    %c0_49 = arith.constant 0 : index
    %252 = vector.load %arg2[%c0_48, %c0_49] : memref<8x12xf32, #tpu.memory_space<vmem>>, vector<8x12xf32>
    %253 = arith.mulf %247, %252 : vector<8x12xf32>
    %c0_50 = arith.constant 0 : index
    %c0_51 = arith.constant 0 : index
    %254 = vector.load %arg7[%c0_50, %c0_51] : memref<1x1xf32, #tpu.memory_space<vmem>>, vector<1x1xf32>
    %255 = vector.broadcast %254 : vector<1x1xf32> to vector<1x12xf32>
    %256 = arith.mulf %255, %251 : vector<1x12xf32>
    %257 = vector.broadcast %256 : vector<1x12xf32> to vector<8x12xf32>
    %258 = arith.addf %253, %257 : vector<8x12xf32>
    %c0_52 = arith.constant 0 : index
    %c0_53 = arith.constant 0 : index
    %259 = vector.load %arg8[%c0_52, %c0_53] : memref<12x128xf32, #tpu.memory_space<vmem>>, vector<12x128xf32>
    %cst_54 = arith.constant dense<0.000000e+00> : vector<8x128xf32>
    %260 = tpu.matmul %258, %259, %cst_54 {dimension_numbers = #tpu.dot_dimension_numbers<[1], [0], [0], [1], [0, 0, 1, 1], [], []>} : vector<8x12xf32>, vector<12x128xf32>, vector<8x128xf32> -> vector<8x128xf32>
    %c0_55 = arith.constant 0 : index
    %c0_56 = arith.constant 0 : index
    %261 = vector.load %arg9[%c0_55, %c0_56] : memref<1x128xf32, #tpu.memory_space<vmem>>, vector<1x128xf32>
    %262 = vector.broadcast %261 : vector<1x128xf32> to vector<8x128xf32>
    %263 = arith.addf %260, %262 : vector<8x128xf32>
    %264 = tpu.iota {dimensions = array<i32: 1>} : vector<1x128xi32>
    %c6_i32_57 = arith.constant 6 : i32
    %265 = vector.broadcast %c6_i32_57 : i32 to vector<1x128xi32>
    %266 = arith.cmpi slt, %264, %265 : vector<1x128xi32>
    %cst_58 = arith.constant -1.000000e+30 : f32
    %267 = vector.shape_cast %266 : vector<1x128xi1> to vector<1x128xi1>
    %268 = vector.broadcast %267 : vector<1x128xi1> to vector<8x128xi1>
    %269 = vector.broadcast %cst_58 : f32 to vector<8x128xf32>
    %270 = arith.select %268, %263, %269 : vector<8x128xi1>, vector<8x128xf32>
    %cst_59 = arith.constant dense<0xFF800000> : vector<8xf32>
    %271 = vector.multi_reduction <maximumf>, %270, %cst_59 [1] : vector<8x128xf32> to vector<8xf32>
    %272 = vector.shape_cast %271 : vector<8xf32> to vector<8x1xf32>
    %273 = vector.broadcast %272 : vector<8x1xf32> to vector<8x128xf32>
    %274 = arith.subf %270, %273 : vector<8x128xf32>
    %275 = math.exp %274 : vector<8x128xf32>
    %cst_60 = arith.constant dense<0.000000e+00> : vector<8xf32>
    %276 = vector.multi_reduction <add>, %275, %cst_60 [1] : vector<8x128xf32> to vector<8xf32>
    %277 = vector.shape_cast %276 : vector<8xf32> to vector<8x1xf32>
    %278 = vector.broadcast %277 : vector<8x1xf32> to vector<8x128xf32>
    %279 = arith.divf %275, %278 : vector<8x128xf32>
    %c0_61 = arith.constant 0 : index
    %c0_62 = arith.constant 0 : index
    %280 = vector.load %arg10[%c0_61, %c0_62] : memref<8x128xf32, #tpu.memory_space<vmem>>, vector<8x128xf32>
    tpu.vector_store %arg10[%c0_61, %c0_62], %279 {strides = array<i32>} : memref<8x128xf32, #tpu.memory_space<vmem>>, vector<8x128xf32>,
    return
  }
  func.func @transform_0(%arg0: i32) -> (i32, i32, i32) {
    %c0_i32 = arith.constant 0 : i32
    %c0_i32_0 = arith.constant 0 : i32
    %c0_i32_1 = arith.constant 0 : i32
    return %c0_i32, %arg0, %c0_i32_0 : i32, i32, i32
  }
  func.func @transform_1(%arg0: i32) -> (i32, i32) {
    %c0_i32 = arith.constant 0 : i32
    %c0_i32_0 = arith.constant 0 : i32
    return %arg0, %c0_i32 : i32, i32
  }
  func.func @transform_2(%arg0: i32) -> (i32, i32) {
    %c0_i32 = arith.constant 0 : i32
    %c0_i32_0 = arith.constant 0 : i32
    %c0_i32_1 = arith.constant 0 : i32
    return %c0_i32, %c0_i32_0 : i32, i32
  }
  func.func @transform_3(%arg0: i32) -> (i32, i32) {
    %c0_i32 = arith.constant 0 : i32
    %c0_i32_0 = arith.constant 0 : i32
    %c0_i32_1 = arith.constant 0 : i32
    return %c0_i32, %c0_i32_0 : i32, i32
  }
  func.func @transform_4(%arg0: i32) -> (i32, i32) {
    %c0_i32 = arith.constant 0 : i32
    %c0_i32_0 = arith.constant 0 : i32
    %c0_i32_1 = arith.constant 0 : i32
    return %c0_i32, %c0_i32_0 : i32, i32
  }
  func.func @transform_5(%arg0: i32) -> (i32, i32) {
    %c0_i32 = arith.constant 0 : i32
    %c0_i32_0 = arith.constant 0 : i32
    %c0_i32_1 = arith.constant 0 : i32
    return %c0_i32, %c0_i32_0 : i32, i32
  }
  func.func @transform_6(%arg0: i32) -> (i32, i32) {
    %c0_i32 = arith.constant 0 : i32
    %c0_i32_0 = arith.constant 0 : i32
    %c0_i32_1 = arith.constant 0 : i32
    return %c0_i32, %c0_i32_0 : i32, i32
  }
  func.func @transform_7(%arg0: i32) -> (i32, i32) {
    %c0_i32 = arith.constant 0 : i32
    %c0_i32_0 = arith.constant 0 : i32
    %c0_i32_1 = arith.constant 0 : i32
    return %c0_i32, %c0_i32_0 : i32, i32
  }
  func.func @transform_8(%arg0: i32) -> (i32, i32) {
    %c0_i32 = arith.constant 0 : i32
    %c0_i32_0 = arith.constant 0 : i32
    %c0_i32_1 = arith.constant 0 : i32
    return %c0_i32, %c0_i32_0 : i32, i32
  }
  func.func @transform_9(%arg0: i32) -> (i32, i32) {
    %c0_i32 = arith.constant 0 : i32
    %c0_i32_0 = arith.constant 0 : i32
    return %arg0, %c0_i32 : i32, i32
  }
}

</mosaic_0001>

<llo_original>
// kernel: tpu_custom_call.1
$region0: #{tpu_custom_call.1}
  #allocation0 [shape = 'u32[]', space=smem, size = 0x4, offset = 0x4, fixed_abs, tag = 'smem constant byte address 0x4 - core index']
  #allocation1 [shape = 'u32[72,128]{1,0:T(1,128)}', space=vmem, size = 0x9000, scoped, tag = 'internal scratch']
  #allocation2 [shape = 'f32[64,128]{1,0:T(8,128)}', space=vmem, size = 0x8000, scoped, tag = 'scratch operand']
  #allocation3 [shape = 'f32[1,1]{1,0:T(1,128)S(1)}', space=vmem, size = 0x200, scoped, tag = 'scoped memory for tpu_custom_call.1']
  %s0 = inlined_call_operand.hbm [shape: f32[8,8,32], index: 0, kind: input, shape index: {}]
  %s1 = inlined_call_operand.hbm [shape: f32[8,12], index: 1, kind: input, shape index: {}]
  %s2 = inlined_call_operand.hbm [shape: f32[32,128], index: 2, kind: input, shape index: {}]
  %s3 = inlined_call_operand.hbm [shape: f32[32,128], index: 3, kind: input, shape index: {}]
  %s4 = inlined_call_operand.vmem [shape: f32[1,128], index: 4, kind: input, shape index: {}]
  %s5 = inlined_call_operand.vmem [shape: f32[1,32], index: 5, kind: input, shape index: {}]
  %s6 = inlined_call_operand.<no memory space> [shape: f32[1,1], index: 6, kind: input, shape index: {}]
  %s7 = inlined_call_operand.hbm [shape: f32[12,128], index: 7, kind: input, shape index: {}]
  %s8 = inlined_call_operand.vmem [shape: f32[1,128], index: 8, kind: input, shape index: {}]
  %s9 = inlined_call_operand.hbm [shape: f32[8,128], index: 9, kind: output, shape index: {}]
  %s10 = sld [smem:[#allocation0]]
  $region66: #{tpu_custom_call.1} parent=0
    _
  %s12 = ssub.s32 1, %s10
  %s13 = scalar_select 0, %s12, %s10
  %v14 = vstv %s6
  %15 = vst [vmem:[#allocation3] sm:$0x1] %v14
  $region1: #{tpu_custom_call.1} parent=0
    #allocation4 [shape = 'u8[32768]{0}', space=vmem, size = 0x8000, scoped, tag = 'input window, operand 0, single buffered']
    #allocation5 [shape = 's32[1]{0}', space=sflag, size = 0x4, scoped, tag = 'scoped memory for tpu_custom_call.1']
    #allocation6 [shape = 's32[1]{0}', space=sflag, size = 0x4, scoped, tag = 'scoped memory for tpu_custom_call.1']
    #allocation7 [shape = 'u8[4096]{0}', space=vmem, size = 0x1000, scoped, tag = 'input window, operand 1, single buffered']
    #allocation8 [shape = 's32[1]{0}', space=sflag, size = 0x4, scoped, tag = 'scoped memory for tpu_custom_call.1']
    #allocation9 [shape = 'u8[16384]{0}', space=vmem, size = 0x4000, scoped, tag = 'input window, operand 2, single buffered']
    #allocation10 [shape = 'u8[16384]{0}', space=vmem, size = 0x4000, scoped, tag = 'input window, operand 3, single buffered']
    #allocation11 [shape = 's32[1]{0}', space=sflag, size = 0x4, scoped, tag = 'scoped memory for tpu_custom_call.1']
    #allocation12 [shape = 'u8[8192]{0}', space=vmem, size = 0x2000, scoped, tag = 'input window, operand 7, single buffered']
    #allocation13 [shape = 'u8[4096]{0}', space=vmem, size = 0x1000, scoped, tag = 'output window, operand 0, single buffered']
    %16 = vsyncpa [#allocation5], 0
    %17 = vsyncpa [#allocation8], 0
    %18 = vsyncpa [#allocation11], 0
    %19 = vsyncpa [#allocation6], 0
    // Predicated region
    $region2: #{tpu_custom_call.1} parent=1 // pred_check
      _
    $region3: #{tpu_custom_call.1} parent=1 // pred_check_branch
      %21 = sbr.rel (0) target = $region5
    $region4: #{tpu_custom_call.1} parent=1 // pred_region
      %23 = vsyncadd [#allocation5], 0
      %s24 = sshll.u32 %s0, 4
      %s25 = int_to_ptr.hbm [resolvable:$true] %s24
      %s26 = sshll.u32 [#allocation4], 4
      %s27 = int_to_ptr.vmem [resolvable:$true] %s26
      %32 = dma.hbm_to_vmem [thread:$0]  %s25, 1024, %s27, [#allocation5], 128, 128, 8
    $region5: #{tpu_custom_call.1} parent=1 // pred_fallthru
      _
    // Predicated region
    $region6: #{tpu_custom_call.1} parent=1 // pred_check
      _
    $region7: #{tpu_custom_call.1} parent=1 // pred_check_branch
      %34 = sbr.rel (0) target = $region9
    $region8: #{tpu_custom_call.1} parent=1 // pred_region
      %36 = vsyncadd [#allocation8], 0
      %s38 = sshll.u32 %s1, 4
      %s39 = int_to_ptr.hbm [resolvable:$true] %s38
      %s40 = sshll.u32 [#allocation7], 4
      %s41 = int_to_ptr.vmem [resolvable:$true] %s40
      %43 = dma.hbm_to_vmem [thread:$0]  %s39, 128, %s41, [#allocation8]
    $region9: #{tpu_custom_call.1} parent=1 // pred_fallthru
      _
    // Predicated region
    $region10: #{tpu_custom_call.1} parent=1 // pred_check
      _
    $region11: #{tpu_custom_call.1} parent=1 // pred_check_branch
      %45 = sbr.rel (0) target = $region13
    $region12: #{tpu_custom_call.1} parent=1 // pred_region
      %47 = vsyncadd [#allocation8], 0
      %s48 = sshll.u32 %s2, 4
      %s49 = int_to_ptr.hbm [resolvable:$true] %s48
      %s50 = sshll.u32 [#allocation9], 4
      %s51 = int_to_ptr.vmem [resolvable:$true] %s50
      %56 = dma.hbm_to_vmem [thread:$0]  %s49, 512, %s51, [#allocation8], 128, 128, 8
    $region13: #{tpu_custom_call.1} parent=1 // pred_fallthru
      _
    // Predicated region
    $region14: #{tpu_custom_call.1} parent=1 // pred_check
      _
    $region15: #{tpu_custom_call.1} parent=1 // pred_check_branch
      %58 = sbr.rel (0) target = $region17
    $region16: #{tpu_custom_call.1} parent=1 // pred_region
      %60 = vsyncadd [#allocation11], 0
      %s61 = sshll.u32 %s3, 4
      %s62 = int_to_ptr.hbm [resolvable:$true] %s61
      %s63 = sshll.u32 [#allocation10], 4
      %s64 = int_to_ptr.vmem [resolvable:$true] %s63
      %69 = dma.hbm_to_vmem [thread:$0]  %s62, 512, %s64, [#allocation11], 128, 128, 8
    $region17: #{tpu_custom_call.1} parent=1 // pred_fallthru
      _
    // Predicated region
    $region18: #{tpu_custom_call.1} parent=1 // pred_check
      _
    $region19: #{tpu_custom_call.1} parent=1 // pred_check_branch
      %71 = sbr.rel (0) target = $region21
    $region20: #{tpu_custom_call.1} parent=1 // pred_region
      _
    $region21: #{tpu_custom_call.1} parent=1 // pred_fallthru
      _
    // Predicated region
    $region22: #{tpu_custom_call.1} parent=1 // pred_check
      _
    $region23: #{tpu_custom_call.1} parent=1 // pred_check_branch
      %73 = sbr.rel (0) target = $region25
    $region24: #{tpu_custom_call.1} parent=1 // pred_region
      _
    $region25: #{tpu_custom_call.1} parent=1 // pred_fallthru
      _
    // Predicated region
    $region26: #{tpu_custom_call.1} parent=1 // pred_check
      _
    $region27: #{tpu_custom_call.1} parent=1 // pred_check_branch
      %75 = sbr.rel (0) target = $region29
    $region28: #{tpu_custom_call.1} parent=1 // pred_region
      _
    $region29: #{tpu_custom_call.1} parent=1 // pred_fallthru
      _
    // Predicated region
    $region30: #{tpu_custom_call.1} parent=1 // pred_check
      _
    $region31: #{tpu_custom_call.1} parent=1 // pred_check_branch
      %77 = sbr.rel (0) target = $region33
    $region32: #{tpu_custom_call.1} parent=1 // pred_region
      %79 = vsyncadd [#allocation11], 0
      %s80 = sshll.u32 %s7, 4
      %s81 = int_to_ptr.hbm [resolvable:$true] %s80
      %s82 = sshll.u32 [#allocation12], 4
      %s83 = int_to_ptr.vmem [resolvable:$true] %s82
      %88 = dma.hbm_to_vmem [thread:$0]  %s81, 256, %s83, [#allocation11], 128, 128, 8
    $region33: #{tpu_custom_call.1} parent=1 // pred_fallthru
      _
    // Predicated region
    $region34: #{tpu_custom_call.1} parent=1 // pred_check
      _
    $region35: #{tpu_custom_call.1} parent=1 // pred_check_branch
      %90 = sbr.rel (0) target = $region37
    $region36: #{tpu_custom_call.1} parent=1 // pred_region
      _
    $region37: #{tpu_custom_call.1} parent=1 // pred_fallthru
      _
    // Predicated region
    $region38: #{tpu_custom_call.1} parent=1 // pred_check
      _
    $region39: #{tpu_custom_call.1} parent=1 // pred_check_branch
      %92 = sbr.rel (0) target = $region41
    $region40: #{tpu_custom_call.1} parent=1 // pred_region
      %94 = dma.done [#allocation5], 1024
    $region41: #{tpu_custom_call.1} parent=1 // pred_fallthru
      _
    // Predicated region
    $region42: #{tpu_custom_call.1} parent=1 // pred_check
      _
    $region43: #{tpu_custom_call.1} parent=1 // pred_check_branch
      %96 = sbr.rel (0) target = $region45
    $region44: #{tpu_custom_call.1} parent=1 // pred_region
      %98 = dma.done [#allocation8], 128
    $region45: #{tpu_custom_call.1} parent=1 // pred_fallthru
      _
    // Predicated region
    $region46: #{tpu_custom_call.1} parent=1 // pred_check
      _
    $region47: #{tpu_custom_call.1} parent=1 // pred_check_branch
      %100 = sbr.rel (0) target = $region49
    $region48: #{tpu_custom_call.1} parent=1 // pred_region
      %102 = dma.done [#allocation8], 512
    $region49: #{tpu_custom_call.1} parent=1 // pred_fallthru
      _
    // Predicated region
    $region50: #{tpu_custom_call.1} parent=1 // pred_check
      _
    $region51: #{tpu_custom_call.1} parent=1 // pred_check_branch
      %104 = sbr.rel (0) target = $region53
    $region52: #{tpu_custom_call.1} parent=1 // pred_region
      %106 = dma.done [#allocation11], 512
    $region53: #{tpu_custom_call.1} parent=1 // pred_fallthru
      _
    // Predicated region
    $region54: #{tpu_custom_call.1} parent=1 // pred_check
      _
    $region55: #{tpu_custom_call.1} parent=1 // pred_check_branch
      %108 = sbr.rel (0) target = $region57
    $region56: #{tpu_custom_call.1} parent=1 // pred_region
      %110 = dma.done [#allocation11], 256
    $region57: #{tpu_custom_call.1} parent=1 // pred_fallthru
      _
    %v111 = vld [vmem:[#allocation4] sm:$0xff]
    %v112 = vld [vmem:[#allocation4 + $0x8] sm:$0xff]
    %v113 = vld [vmem:[#allocation4 + $0x10] sm:$0xff]
    %v114 = vld [vmem:[#allocation4 + $0x18] sm:$0xff]
    %v115 = vld [vmem:[#allocation4 + $0x20] sm:$0xff]
    %v116 = vld [vmem:[#allocation4 + $0x28] sm:$0xff]
    %v117 = vld [vmem:[#allocation4 + $0x30] sm:$0xff]
    %v118 = vld [vmem:[#allocation4 + $0x38] sm:$0xff]
    %v119 = vld [vmem:[#allocation9] sm:$0xff]
    %v120 = vld [vmem:[#allocation9 + $0x8] sm:$0xff]
    %v121 = vld [vmem:[#allocation9 + $0x10] sm:$0xff]
    %v122 = vld [vmem:[#allocation9 + $0x18] sm:$0xff]
    %v123 = vld [vmem:[%s4] sm:$0x1]
    %v125 = vperm.slane %v123, 0
    %vm127 = vcmask 261120
    %v129 = vsel %vm127, %v111, 0
    %v132 = vsel %vm127, %v112, 0
    %v135 = vsel %vm127, %v113, 0
    %v138 = vsel %vm127, %v114, 0
    %v141 = vsel %vm127, %v115, 0
    %v144 = vsel %vm127, %v116, 0
    %v147 = vsel %vm127, %v117, 0
    %v150 = vsel %vm127, %v118, 0
    %152 = vmatpush.msra.mxu0 0.0
    %153 = vmatpush.msra.mxu0 0.0
    %154 = vmatpush.msra.mxu0 0.0
    %155 = vmatpush.msra.mxu0 0.0
    %156 = vmatpush.msra.mxu0 0.0
    %157 = vmatpush.msra.mxu0 0.0
    %158 = vmatpush.msra.mxu0 0.0
    %159 = vmatpush.msra.mxu0 0.0
    %160 = vmatpush.msra.mxu0 0.0
    %161 = vmatpush.msra.mxu0 0.0
    %162 = vmatpush.msra.mxu0 0.0
    %163 = vmatpush.msra.mxu0 0.0
    %164 = vmatpush.msra.mxu0 %v122
    %165 = vmatpush.msra.mxu0 %v121
    %166 = vmatpush.msra.mxu0 %v120
    %167 = vmatpush.msra.mxu0 %v119
    %168 = vmatmul.f32.gmra.mxu0 %v129
    %v169 = vpop.f32.mrf.mxu0
    %v170 = vadd.f32 %v125, %v169
    %171 = vmatmul.f32.gmra.mxu0 %v132
    %v172 = vpop.f32.mrf.mxu0
    %v173 = vadd.f32 %v125, %v172
    %174 = vmatmul.f32.gmra.mxu0 %v135
    %v175 = vpop.f32.mrf.mxu0
    %v176 = vadd.f32 %v125, %v175
    %177 = vmatmul.f32.gmra.mxu0 %v138
    %v178 = vpop.f32.mrf.mxu0
    %v179 = vadd.f32 %v125, %v178
    %180 = vmatmul.f32.gmra.mxu0 %v141
    %v181 = vpop.f32.mrf.mxu0
    %v182 = vadd.f32 %v125, %v181
    %183 = vmatmul.f32.gmra.mxu0 %v144
    %v184 = vpop.f32.mrf.mxu0
    %v185 = vadd.f32 %v125, %v184
    %186 = vmatmul.f32.gmra.mxu0 %v147
    %v187 = vpop.f32.mrf.mxu0
    %v188 = vadd.f32 %v125, %v187
    %189 = vmatmul.f32.gmra.mxu0 %v150
    %v190 = vpop.f32.mrf.mxu0
    %v191 = vadd.f32 %v125, %v190
    %192 = vdwg.mxu0
    %193 = vst [vmem:[#allocation2] sm:$0xff] %v170
    %194 = vst [vmem:[#allocation2 + $0x8] sm:$0xff] %v173
    %195 = vst [vmem:[#allocation2 + $0x10] sm:$0xff] %v176
    %196 = vst [vmem:[#allocation2 + $0x18] sm:$0xff] %v179
    %197 = vst [vmem:[#allocation2 + $0x20] sm:$0xff] %v182
    %198 = vst [vmem:[#allocation2 + $0x28] sm:$0xff] %v185
    %199 = vst [vmem:[#allocation2 + $0x30] sm:$0xff] %v188
    %200 = vst [vmem:[#allocation2 + $0x38] sm:$0xff] %v191
    %v201 = vld [vmem:[#allocation10] sm:$0xff]
    %v202 = vld [vmem:[#allocation10 + $0x8] sm:$0xff]
    %v203 = vld [vmem:[#allocation10 + $0x10] sm:$0xff]
    %v204 = vld [vmem:[#allocation10 + $0x18] sm:$0xff]
    %v205 = vld [vmem:[%s5] sm:$0x1]
    %v207 = vperm.slane %v205, 0
    %v208 = vlaneseq
    %v209 = vand.u32 %v208, 127
    %v210 = vld [vmem:[#allocation2] sm:$0xff]
    %v212 = vsel %vm127, 0.0, 0
    %214 = vmatpush.msra.mxu0 0.0
    %215 = vmatpush.msra.mxu0 0.0
    %216 = vmatpush.msra.mxu0 0.0
    %217 = vmatpush.msra.mxu0 0.0
    %218 = vmatpush.msra.mxu0 0.0
    %219 = vmatpush.msra.mxu0 0.0
    %220 = vmatpush.msra.mxu0 0.0
    %221 = vmatpush.msra.mxu0 0.0
    %222 = vmatpush.msra.mxu0 0.0
    %223 = vmatpush.msra.mxu0 0.0
    %224 = vmatpush.msra.mxu0 0.0
    %225 = vmatpush.msra.mxu0 0.0
    %226 = vmatpush.msra.mxu0 %v204
    %227 = vmatpush.msra.mxu0 %v203
    %228 = vmatpush.msra.mxu0 %v202
    %229 = vmatpush.msra.mxu0 %v201
    %230 = vmatmul.f32.gmra.mxu0 %v212
    %v231 = vpop.f32.mrf.mxu0
    %v232 = vadd.f32 0.0, %v231
    %233 = vdwg.mxu0
    %v234 = vadd.f32 %v210, %v232
    %v235 = vxor.u32 %v234, 2147483648
    %v236 = vmul.f32 %v235, 1.442695
    %v237 = vpow.pop %v236
    %v238 = vadd.f32 %v237, 1.0
    %v239 = vrcp.pop %v238
    %v240 = vmul.f32 %v238, %v239
    %v241 = vsub.f32 1.0, %v240
    %v242 = vmul.f32 %v239, %v241
    %v243 = vadd.f32 %v239, %v242
    %vm244 = vweird.f32 %v238
    %vm245 = vweird.f32 %v239
    %vm246 = vmor %vm244, %vm245
    %v247 = vsel %vm246, %v239, %v243
    %v248 = vand.u32 2147483647, %v238
    %vm249 = vcmp.eq.f32.partialorder %v248, 8.507059e+37
    %v250 = vand.u32 %v238, 2147483648
    %v251 = vor.u32 1.1754944e-38, %v250
    %v252 = vsel %vm249, %v251, %v247
    %v253 = vmul.f32 1.0, %v252
    %v254 = vtanh.pop %v234
    %v255 = vmul.f32 %v253, 0.0
    %257 = vrot.lane.b32.xlu0 %v254, 64
    %v258 = vpop.permute.xlu0 %257
    %v260 = vmul.f32 %v253, %v258
    %262 = vrot.lane.b32.xlu0 %v260, 32
    %v263 = vpop.permute.xlu0 %262
    %v265 = vadd.f32 %v255, %v263
    %v266 = vtanh.pop %v265
    %268 = vrot.lane.b32.xlu0 %v266, 64
    %v269 = vpop.permute.xlu0 %268
    %v271 = vmul.f32 %v253, %v269
    %272 = vrot.lane.b32.xlu0 %v207, 96
    %v273 = vpop.permute.xlu0 %272
    %v275 = vmul.f32 %v271, %v273
    %277 = vrot.lane.b32.xlu0 %v275, 32
    %v278 = vpop.permute.xlu0 %277
    %v280 = vsel %vm127, %v278, 0.0
    %281 = vadd.xlane.f32.xlu0 %v280
    %v282 = vpop.xlane.xlu0 %281
    %vm283 = vcmp.eq.s32.totalorder %v209, 0
    %v284 = vsel %vm283, 1, 0
    %v285 = vcvt.s32.f32 %v284
    %v286 = vmul.f32 %v282, %v285
    %v287 = vadd.f32 %v286, 0.0
    %v288 = vld [vmem:[#allocation2 + $0x8] sm:$0xff]
    %290 = vrot.lane.b32.xlu0 %v271, 32
    %v291 = vpop.permute.xlu0 %290
    %v292 = vsel %vm127, %v291, 0
    %294 = vmatpush.msra.mxu0 0.0
    %295 = vmatpush.msra.mxu0 0.0
    %296 = vmatpush.msra.mxu0 0.0
    %297 = vmatpush.msra.mxu0 0.0
    %298 = vmatpush.msra.mxu0 0.0
    %299 = vmatpush.msra.mxu0 0.0
    %300 = vmatpush.msra.mxu0 0.0
    %301 = vmatpush.msra.mxu0 0.0
    %302 = vmatpush.msra.mxu0 0.0
    %303 = vmatpush.msra.mxu0 0.0
    %304 = vmatpush.msra.mxu0 0.0
    %305 = vmatpush.msra.mxu0 0.0
    %306 = vmatpush.msra.mxu0 %v204
    %307 = vmatpush.msra.mxu0 %v203
    %308 = vmatpush.msra.mxu0 %v202
    %309 = vmatpush.msra.mxu0 %v201
    %310 = vmatmul.f32.gmra.mxu0 %v292
    %v311 = vpop.f32.mrf.mxu0
    %v312 = vadd.f32 0.0, %v311
    %313 = vdwg.mxu0
    %v314 = vadd.f32 %v288, %v312
    %v315 = vxor.u32 %v314, 2147483648
    %v316 = vmul.f32 %v315, 1.442695
    %v317 = vpow.pop %v316
    %v318 = vadd.f32 %v317, 1.0
    %v319 = vrcp.pop %v318
    %v320 = vmul.f32 %v318, %v319
    %v321 = vsub.f32 1.0, %v320
    %v322 = vmul.f32 %v319, %v321
    %v323 = vadd.f32 %v319, %v322
    %vm324 = vweird.f32 %v318
    %vm325 = vweird.f32 %v319
    %vm326 = vmor %vm324, %vm325
    %v327 = vsel %vm326, %v319, %v323
    %v328 = vand.u32 2147483647, %v318
    %vm329 = vcmp.eq.f32.partialorder %v328, 8.507059e+37
    %v330 = vand.u32 %v318, 2147483648
    %v331 = vor.u32 1.1754944e-38, %v330
    %v332 = vsel %vm329, %v331, %v327
    %v333 = vmul.f32 1.0, %v332
    %v334 = vtanh.pop %v314
    %v335 = vmul.f32 %v333, %v265
    %337 = vrot.lane.b32.xlu0 %v334, 64
    %v338 = vpop.permute.xlu0 %337
    %v340 = vmul.f32 %v333, %v338
    %342 = vrot.lane.b32.xlu0 %v340, 32
    %v343 = vpop.permute.xlu0 %342
    %v345 = vadd.f32 %v335, %v343
    %v346 = vtanh.pop %v345
    %348 = vrot.lane.b32.xlu0 %v346, 64
    %v349 = vpop.permute.xlu0 %348
    %v351 = vmul.f32 %v333, %v349
    %v352 = vmul.f32 %v351, %v273
    %354 = vrot.lane.b32.xlu0 %v352, 32
    %v355 = vpop.permute.xlu0 %354
    %v357 = vsel %vm127, %v355, 0.0
    %358 = vadd.xlane.f32.xlu0 %v357
    %v359 = vpop.xlane.xlu0 %358
    %vm360 = vcmp.eq.s32.totalorder %v209, 1
    %v361 = vsel %vm360, 1, 0
    %v362 = vcvt.s32.f32 %v361
    %v363 = vmul.f32 %v359, %v362
    %v364 = vadd.f32 %v287, %v363
    %v365 = vld [vmem:[#allocation2 + $0x10] sm:$0xff]
    %367 = vrot.lane.b32.xlu0 %v351, 32
    %v368 = vpop.permute.xlu0 %367
    %v369 = vsel %vm127, %v368, 0
    %371 = vmatpush.msra.mxu0 0.0
    %372 = vmatpush.msra.mxu0 0.0
    %373 = vmatpush.msra.mxu0 0.0
    %374 = vmatpush.msra.mxu0 0.0
    %375 = vmatpush.msra.mxu0 0.0
    %376 = vmatpush.msra.mxu0 0.0
    %377 = vmatpush.msra.mxu0 0.0
    %378 = vmatpush.msra.mxu0 0.0
    %379 = vmatpush.msra.mxu0 0.0
    %380 = vmatpush.msra.mxu0 0.0
    %381 = vmatpush.msra.mxu0 0.0
    %382 = vmatpush.msra.mxu0 0.0
    %383 = vmatpush.msra.mxu0 %v204
    %384 = vmatpush.msra.mxu0 %v203
    %385 = vmatpush.msra.mxu0 %v202
    %386 = vmatpush.msra.mxu0 %v201
    %387 = vmatmul.f32.gmra.mxu0 %v369
    %v388 = vpop.f32.mrf.mxu0
    %v389 = vadd.f32 0.0, %v388
    %390 = vdwg.mxu0
    %v391 = vadd.f32 %v365, %v389
    %v392 = vxor.u32 %v391, 2147483648
    %v393 = vmul.f32 %v392, 1.442695
    %v394 = vpow.pop %v393
    %v395 = vadd.f32 %v394, 1.0
    %v396 = vrcp.pop %v395
    %v397 = vmul.f32 %v395, %v396
    %v398 = vsub.f32 1.0, %v397
    %v399 = vmul.f32 %v396, %v398
    %v400 = vadd.f32 %v396, %v399
    %vm401 = vweird.f32 %v395
    %vm402 = vweird.f32 %v396
    %vm403 = vmor %vm401, %vm402
    %v404 = vsel %vm403, %v396, %v400
    %v405 = vand.u32 2147483647, %v395
    %vm406 = vcmp.eq.f32.partialorder %v405, 8.507059e+37
    %v407 = vand.u32 %v395, 2147483648
    %v408 = vor.u32 1.1754944e-38, %v407
    %v409 = vsel %vm406, %v408, %v404
    %v410 = vmul.f32 1.0, %v409
    %v411 = vtanh.pop %v391
    %v412 = vmul.f32 %v410, %v345
    %414 = vrot.lane.b32.xlu0 %v411, 64
    %v415 = vpop.permute.xlu0 %414
    %v417 = vmul.f32 %v410, %v415
    %419 = vrot.lane.b32.xlu0 %v417, 32
    %v420 = vpop.permute.xlu0 %419
    %v422 = vadd.f32 %v412, %v420
    %v423 = vtanh.pop %v422
    %425 = vrot.lane.b32.xlu0 %v423, 64
    %v426 = vpop.permute.xlu0 %425
    %v428 = vmul.f32 %v410, %v426
    %v429 = vmul.f32 %v428, %v273
    %431 = vrot.lane.b32.xlu0 %v429, 32
    %v432 = vpop.permute.xlu0 %431
    %v434 = vsel %vm127, %v432, 0.0
    %435 = vadd.xlane.f32.xlu0 %v434
    %v436 = vpop.xlane.xlu0 %435
    %vm437 = vcmp.eq.s32.totalorder %v209, 2
    %v438 = vsel %vm437, 1, 0
    %v439 = vcvt.s32.f32 %v438
    %v440 = vmul.f32 %v436, %v439
    %v441 = vadd.f32 %v364, %v440
    %v442 = vld [vmem:[#allocation2 + $0x18] sm:$0xff]
    %444 = vrot.lane.b32.xlu0 %v428, 32
    %v445 = vpop.permute.xlu0 %444
    %v446 = vsel %vm127, %v445, 0
    %448 = vmatpush.msra.mxu0 0.0
    %449 = vmatpush.msra.mxu0 0.0
    %450 = vmatpush.msra.mxu0 0.0
    %451 = vmatpush.msra.mxu0 0.0
    %452 = vmatpush.msra.mxu0 0.0
    %453 = vmatpush.msra.mxu0 0.0
    %454 = vmatpush.msra.mxu0 0.0
    %455 = vmatpush.msra.mxu0 0.0
    %456 = vmatpush.msra.mxu0 0.0
    %457 = vmatpush.msra.mxu0 0.0
    %458 = vmatpush.msra.mxu0 0.0
    %459 = vmatpush.msra.mxu0 0.0
    %460 = vmatpush.msra.mxu0 %v204
    %461 = vmatpush.msra.mxu0 %v203
    %462 = vmatpush.msra.mxu0 %v202
    %463 = vmatpush.msra.mxu0 %v201
    %464 = vmatmul.f32.gmra.mxu0 %v446
    %v465 = vpop.f32.mrf.mxu0
    %v466 = vadd.f32 0.0, %v465
    %467 = vdwg.mxu0
    %v468 = vadd.f32 %v442, %v466
    %v469 = vxor.u32 %v468, 2147483648
    %v470 = vmul.f32 %v469, 1.442695
    %v471 = vpow.pop %v470
    %v472 = vadd.f32 %v471, 1.0
    %v473 = vrcp.pop %v472
    %v474 = vmul.f32 %v472, %v473
    %v475 = vsub.f32 1.0, %v474
    %v476 = vmul.f32 %v473, %v475
    %v477 = vadd.f32 %v473, %v476
    %vm478 = vweird.f32 %v472
    %vm479 = vweird.f32 %v473
    %vm480 = vmor %vm478, %vm479
    %v481 = vsel %vm480, %v473, %v477
    %v482 = vand.u32 2147483647, %v472
    %vm483 = vcmp.eq.f32.partialorder %v482, 8.507059e+37
    %v484 = vand.u32 %v472, 2147483648
    %v485 = vor.u32 1.1754944e-38, %v484
    %v486 = vsel %vm483, %v485, %v481
    %v487 = vmul.f32 1.0, %v486
    %v488 = vtanh.pop %v468
    %v489 = vmul.f32 %v487, %v422
    %491 = vrot.lane.b32.xlu0 %v488, 64
    %v492 = vpop.permute.xlu0 %491
    %v494 = vmul.f32 %v487, %v492
    %496 = vrot.lane.b32.xlu0 %v494, 32
    %v497 = vpop.permute.xlu0 %496
    %v499 = vadd.f32 %v489, %v497
    %v500 = vtanh.pop %v499
    %502 = vrot.lane.b32.xlu0 %v500, 64
    %v503 = vpop.permute.xlu0 %502
    %v505 = vmul.f32 %v487, %v503
    %v506 = vmul.f32 %v505, %v273
    %508 = vrot.lane.b32.xlu0 %v506, 32
    %v509 = vpop.permute.xlu0 %508
    %v511 = vsel %vm127, %v509, 0.0
    %512 = vadd.xlane.f32.xlu0 %v511
    %v513 = vpop.xlane.xlu0 %512
    %vm514 = vcmp.eq.s32.totalorder %v209, 3
    %v515 = vsel %vm514, 1, 0
    %v516 = vcvt.s32.f32 %v515
    %v517 = vmul.f32 %v513, %v516
    %v518 = vadd.f32 %v441, %v517
    %v519 = vld [vmem:[#allocation2 + $0x20] sm:$0xff]
    %521 = vrot.lane.b32.xlu0 %v505, 32
    %v522 = vpop.permute.xlu0 %521
    %v523 = vsel %vm127, %v522, 0
    %525 = vmatpush.msra.mxu0 0.0
    %526 = vmatpush.msra.mxu0 0.0
    %527 = vmatpush.msra.mxu0 0.0
    %528 = vmatpush.msra.mxu0 0.0
    %529 = vmatpush.msra.mxu0 0.0
    %530 = vmatpush.msra.mxu0 0.0
    %531 = vmatpush.msra.mxu0 0.0
    %532 = vmatpush.msra.mxu0 0.0
    %533 = vmatpush.msra.mxu0 0.0
    %534 = vmatpush.msra.mxu0 0.0
    %535 = vmatpush.msra.mxu0 0.0
    %536 = vmatpush.msra.mxu0 0.0
    %537 = vmatpush.msra.mxu0 %v204
    %538 = vmatpush.msra.mxu0 %v203
    %539 = vmatpush.msra.mxu0 %v202
    %540 = vmatpush.msra.mxu0 %v201
    %541 = vmatmul.f32.gmra.mxu0 %v523
    %v542 = vpop.f32.mrf.mxu0
    %v543 = vadd.f32 0.0, %v542
    %544 = vdwg.mxu0
    %v545 = vadd.f32 %v519, %v543
    %v546 = vxor.u32 %v545, 2147483648
    %v547 = vmul.f32 %v546, 1.442695
    %v548 = vpow.pop %v547
    %v549 = vadd.f32 %v548, 1.0
    %v550 = vrcp.pop %v549
    %v551 = vmul.f32 %v549, %v550
    %v552 = vsub.f32 1.0, %v551
    %v553 = vmul.f32 %v550, %v552
    %v554 = vadd.f32 %v550, %v553
    %vm555 = vweird.f32 %v549
    %vm556 = vweird.f32 %v550
    %vm557 = vmor %vm555, %vm556
    %v558 = vsel %vm557, %v550, %v554
    %v559 = vand.u32 2147483647, %v549
    %vm560 = vcmp.eq.f32.partialorder %v559, 8.507059e+37
    %v561 = vand.u32 %v549, 2147483648
    %v562 = vor.u32 1.1754944e-38, %v561
    %v563 = vsel %vm560, %v562, %v558
    %v564 = vmul.f32 1.0, %v563
    %v565 = vtanh.pop %v545
    %v566 = vmul.f32 %v564, %v499
    %568 = vrot.lane.b32.xlu0 %v565, 64
    %v569 = vpop.permute.xlu0 %568
    %v571 = vmul.f32 %v564, %v569
    %573 = vrot.lane.b32.xlu0 %v571, 32
    %v574 = vpop.permute.xlu0 %573
    %v576 = vadd.f32 %v566, %v574
    %v577 = vtanh.pop %v576
    %579 = vrot.lane.b32.xlu0 %v577, 64
    %v580 = vpop.permute.xlu0 %579
    %v582 = vmul.f32 %v564, %v580
    %v583 = vmul.f32 %v582, %v273
    %585 = vrot.lane.b32.xlu0 %v583, 32
    %v586 = vpop.permute.xlu0 %585
    %v588 = vsel %vm127, %v586, 0.0
    %589 = vadd.xlane.f32.xlu0 %v588
    %v590 = vpop.xlane.xlu0 %589
    %vm591 = vcmp.eq.s32.totalorder %v209, 4
    %v592 = vsel %vm591, 1, 0
    %v593 = vcvt.s32.f32 %v592
    %v594 = vmul.f32 %v590, %v593
    %v595 = vadd.f32 %v518, %v594
    %v596 = vld [vmem:[#allocation2 + $0x28] sm:$0xff]
    %598 = vrot.lane.b32.xlu0 %v582, 32
    %v599 = vpop.permute.xlu0 %598
    %v600 = vsel %vm127, %v599, 0
    %602 = vmatpush.msra.mxu0 0.0
    %603 = vmatpush.msra.mxu0 0.0
    %604 = vmatpush.msra.mxu0 0.0
    %605 = vmatpush.msra.mxu0 0.0
    %606 = vmatpush.msra.mxu0 0.0
    %607 = vmatpush.msra.mxu0 0.0
    %608 = vmatpush.msra.mxu0 0.0
    %609 = vmatpush.msra.mxu0 0.0
    %610 = vmatpush.msra.mxu0 0.0
    %611 = vmatpush.msra.mxu0 0.0
    %612 = vmatpush.msra.mxu0 0.0
    %613 = vmatpush.msra.mxu0 0.0
    %614 = vmatpush.msra.mxu0 %v204
    %615 = vmatpush.msra.mxu0 %v203
    %616 = vmatpush.msra.mxu0 %v202
    %617 = vmatpush.msra.mxu0 %v201
    %618 = vmatmul.f32.gmra.mxu0 %v600
    %v619 = vpop.f32.mrf.mxu0
    %v620 = vadd.f32 0.0, %v619
    %621 = vdwg.mxu0
    %v622 = vadd.f32 %v596, %v620
    %v623 = vxor.u32 %v622, 2147483648
    %v624 = vmul.f32 %v623, 1.442695
    %v625 = vpow.pop %v624
    %v626 = vadd.f32 %v625, 1.0
    %v627 = vrcp.pop %v626
    %v628 = vmul.f32 %v626, %v627
    %v629 = vsub.f32 1.0, %v628
    %v630 = vmul.f32 %v627, %v629
    %v631 = vadd.f32 %v627, %v630
    %vm632 = vweird.f32 %v626
    %vm633 = vweird.f32 %v627
    %vm634 = vmor %vm632, %vm633
    %v635 = vsel %vm634, %v627, %v631
    %v636 = vand.u32 2147483647, %v626
    %vm637 = vcmp.eq.f32.partialorder %v636, 8.507059e+37
    %v638 = vand.u32 %v626, 2147483648
    %v639 = vor.u32 1.1754944e-38, %v638
    %v640 = vsel %vm637, %v639, %v635
    %v641 = vmul.f32 1.0, %v640
    %v642 = vtanh.pop %v622
    %v643 = vmul.f32 %v641, %v576
    %645 = vrot.lane.b32.xlu0 %v642, 64
    %v646 = vpop.permute.xlu0 %645
    %v648 = vmul.f32 %v641, %v646
    %650 = vrot.lane.b32.xlu0 %v648, 32
    %v651 = vpop.permute.xlu0 %650
    %v653 = vadd.f32 %v643, %v651
    %v654 = vtanh.pop %v653
    %656 = vrot.lane.b32.xlu0 %v654, 64
    %v657 = vpop.permute.xlu0 %656
    %v659 = vmul.f32 %v641, %v657
    %v660 = vmul.f32 %v659, %v273
    %662 = vrot.lane.b32.xlu0 %v660, 32
    %v663 = vpop.permute.xlu0 %662
    %v665 = vsel %vm127, %v663, 0.0
    %666 = vadd.xlane.f32.xlu0 %v665
    %v667 = vpop.xlane.xlu0 %666
    %vm668 = vcmp.eq.s32.totalorder %v209, 5
    %v669 = vsel %vm668, 1, 0
    %v670 = vcvt.s32.f32 %v669
    %v671 = vmul.f32 %v667, %v670
    %v672 = vadd.f32 %v595, %v671
    %v673 = vld [vmem:[#allocation2 + $0x30] sm:$0xff]
    %675 = vrot.lane.b32.xlu0 %v659, 32
    %v676 = vpop.permute.xlu0 %675
    %v677 = vsel %vm127, %v676, 0
    %679 = vmatpush.msra.mxu0 0.0
    %680 = vmatpush.msra.mxu0 0.0
    %681 = vmatpush.msra.mxu0 0.0
    %682 = vmatpush.msra.mxu0 0.0
    %683 = vmatpush.msra.mxu0 0.0
    %684 = vmatpush.msra.mxu0 0.0
    %685 = vmatpush.msra.mxu0 0.0
    %686 = vmatpush.msra.mxu0 0.0
    %687 = vmatpush.msra.mxu0 0.0
    %688 = vmatpush.msra.mxu0 0.0
    %689 = vmatpush.msra.mxu0 0.0
    %690 = vmatpush.msra.mxu0 0.0
    %691 = vmatpush.msra.mxu0 %v204
    %692 = vmatpush.msra.mxu0 %v203
    %693 = vmatpush.msra.mxu0 %v202
    %694 = vmatpush.msra.mxu0 %v201
    %695 = vmatmul.f32.gmra.mxu0 %v677
    %v696 = vpop.f32.mrf.mxu0
    %v697 = vadd.f32 0.0, %v696
    %698 = vdwg.mxu0
    %v699 = vadd.f32 %v673, %v697
    %v700 = vxor.u32 %v699, 2147483648
    %v701 = vmul.f32 %v700, 1.442695
    %v702 = vpow.pop %v701
    %v703 = vadd.f32 %v702, 1.0
    %v704 = vrcp.pop %v703
    %v705 = vmul.f32 %v703, %v704
    %v706 = vsub.f32 1.0, %v705
    %v707 = vmul.f32 %v704, %v706
    %v708 = vadd.f32 %v704, %v707
    %vm709 = vweird.f32 %v703
    %vm710 = vweird.f32 %v704
    %vm711 = vmor %vm709, %vm710
    %v712 = vsel %vm711, %v704, %v708
    %v713 = vand.u32 2147483647, %v703
    %vm714 = vcmp.eq.f32.partialorder %v713, 8.507059e+37
    %v715 = vand.u32 %v703, 2147483648
    %v716 = vor.u32 1.1754944e-38, %v715
    %v717 = vsel %vm714, %v716, %v712
    %v718 = vmul.f32 1.0, %v717
    %v719 = vtanh.pop %v699
    %v720 = vmul.f32 %v718, %v653
    %722 = vrot.lane.b32.xlu0 %v719, 64
    %v723 = vpop.permute.xlu0 %722
    %v725 = vmul.f32 %v718, %v723
    %727 = vrot.lane.b32.xlu0 %v725, 32
    %v728 = vpop.permute.xlu0 %727
    %v730 = vadd.f32 %v720, %v728
    %v731 = vtanh.pop %v730
    %733 = vrot.lane.b32.xlu0 %v731, 64
    %v734 = vpop.permute.xlu0 %733
    %v736 = vmul.f32 %v718, %v734
    %v737 = vmul.f32 %v736, %v273
    %739 = vrot.lane.b32.xlu0 %v737, 32
    %v740 = vpop.permute.xlu0 %739
    %v742 = vsel %vm127, %v740, 0.0
    %743 = vadd.xlane.f32.xlu0 %v742
    %v744 = vpop.xlane.xlu0 %743
    %vm745 = vcmp.eq.s32.totalorder %v209, 6
    %v746 = vsel %vm745, 1, 0
    %v747 = vcvt.s32.f32 %v746
    %v748 = vmul.f32 %v744, %v747
    %v749 = vadd.f32 %v672, %v748
    %v750 = vld [vmem:[#allocation2 + $0x38] sm:$0xff]
    %752 = vrot.lane.b32.xlu0 %v736, 32
    %v753 = vpop.permute.xlu0 %752
    %v754 = vsel %vm127, %v753, 0
    %756 = vmatpush.msra.mxu0 0.0
    %757 = vmatpush.msra.mxu0 0.0
    %758 = vmatpush.msra.mxu0 0.0
    %759 = vmatpush.msra.mxu0 0.0
    %760 = vmatpush.msra.mxu0 0.0
    %761 = vmatpush.msra.mxu0 0.0
    %762 = vmatpush.msra.mxu0 0.0
    %763 = vmatpush.msra.mxu0 0.0
    %764 = vmatpush.msra.mxu0 0.0
    %765 = vmatpush.msra.mxu0 0.0
    %766 = vmatpush.msra.mxu0 0.0
    %767 = vmatpush.msra.mxu0 0.0
    %768 = vmatpush.msra.mxu0 %v204
    %769 = vmatpush.msra.mxu0 %v203
    %770 = vmatpush.msra.mxu0 %v202
    %771 = vmatpush.msra.mxu0 %v201
    %772 = vmatmul.f32.gmra.mxu0 %v754
    %v773 = vpop.f32.mrf.mxu0
    %v774 = vadd.f32 0.0, %v773
    %775 = vdwg.mxu0
    %v776 = vadd.f32 %v750, %v774
    %v777 = vxor.u32 %v776, 2147483648
    %v778 = vmul.f32 %v777, 1.442695
    %v779 = vpow.pop %v778
    %v780 = vadd.f32 %v779, 1.0
    %v781 = vrcp.pop %v780
    %v782 = vmul.f32 %v780, %v781
    %v783 = vsub.f32 1.0, %v782
    %v784 = vmul.f32 %v781, %v783
    %v785 = vadd.f32 %v781, %v784
    %vm786 = vweird.f32 %v780
    %vm787 = vweird.f32 %v781
    %vm788 = vmor %vm786, %vm787
    %v789 = vsel %vm788, %v781, %v785
    %v790 = vand.u32 2147483647, %v780
    %vm791 = vcmp.eq.f32.partialorder %v790, 8.507059e+37
    %v792 = vand.u32 %v780, 2147483648
    %v793 = vor.u32 1.1754944e-38, %v792
    %v794 = vsel %vm791, %v793, %v789
    %v795 = vmul.f32 1.0, %v794
    %v796 = vtanh.pop %v776
    %v797 = vmul.f32 %v795, %v730
    %799 = vrot.lane.b32.xlu0 %v796, 64
    %v800 = vpop.permute.xlu0 %799
    %v802 = vmul.f32 %v795, %v800
    %804 = vrot.lane.b32.xlu0 %v802, 32
    %v805 = vpop.permute.xlu0 %804
    %v807 = vadd.f32 %v797, %v805
    %v808 = vtanh.pop %v807
    %810 = vrot.lane.b32.xlu0 %v808, 64
    %v811 = vpop.permute.xlu0 %810
    %v813 = vmul.f32 %v795, %v811
    %v814 = vmul.f32 %v813, %v273
    %816 = vrot.lane.b32.xlu0 %v814, 32
    %v817 = vpop.permute.xlu0 %816
    %v819 = vsel %vm127, %v817, 0.0
    %820 = vadd.xlane.f32.xlu0 %v819
    %v821 = vpop.xlane.xlu0 %820
    %vm822 = vcmp.eq.s32.totalorder %v209, 7
    %v823 = vsel %vm822, 1, 0
    %v824 = vcvt.s32.f32 %v823
    %v825 = vmul.f32 %v821, %v824
    %v826 = vadd.f32 %v749, %v825
    %vm827 = vcmp.lt.s32.totalorder %v209, 8
    %v828 = vsel %vm827, 1, 0
    %v829 = vcvt.s32.f32 %v828
    %v830 = vld [vmem:[#allocation7] sm:$0xff]
    %v831 = vmul.f32 %v826, %v830
    %v832 = vld [vmem:[#allocation3] sm:$0x1]
    %834 = vset.pattern.permute.xlu0 0
    %835 = vperm.xlu0 %834, %v832
    %v836 = vpop.permute.xlu0 %835
    %v838 = vperm.slane %v836, 0
    %v839 = vmul.f32 %v838, %v829
    %v840 = vadd.f32 %v831, %v839
    %v841 = vld [vmem:[#allocation12] sm:$0xff]
    %v842 = vld [vmem:[#allocation12 + $0x8] sm:$0xf]
    %v843 = vld [vmem:[%s8] sm:$0x1]
    %v845 = vperm.slane %v843, 0
    %vm847 = vcmask 97280
    %v849 = vsel %vm847, %v840, 0
    %vm851 = vcmask 1043456
    %v853 = vsel %vm851, %v842, 0
    %855 = vmatpush.msra.mxu0 0.0
    %856 = vmatpush.msra.mxu0 0.0
    %857 = vmatpush.msra.mxu0 0.0
    %858 = vmatpush.msra.mxu0 0.0
    %859 = vmatpush.msra.mxu0 0.0
    %860 = vmatpush.msra.mxu0 0.0
    %861 = vmatpush.msra.mxu0 0.0
    %862 = vmatpush.msra.mxu0 0.0
    %863 = vmatpush.msra.mxu0 0.0
    %864 = vmatpush.msra.mxu0 0.0
    %865 = vmatpush.msra.mxu0 0.0
    %866 = vmatpush.msra.mxu0 0.0
    %867 = vmatpush.msra.mxu0 0.0
    %868 = vmatpush.msra.mxu0 0.0
    %869 = vmatpush.msra.mxu0 %v853
    %870 = vmatpush.msra.mxu0 %v841
    %871 = vmatmul.f32.gmra.mxu0 %v849
    %v872 = vpop.f32.mrf.mxu0
    %v873 = vadd.f32 %v845, %v872
    %874 = vdwg.mxu0
    %vm875 = vcmp.lt.s32.totalorder %v209, 6
    %v876 = vsel %vm875, 1, 0
    %vm877 = vcmp.eq.s32.totalorder %v876, 1
    %v878 = vsel %vm877, %v873, -1e+30
    %879 = vmax.xlane.f32.xlu0 %v878
    %v880 = vpop.xlane.xlu0 %879
    %v881 = vsub.f32 %v878, %v880
    %v882 = vmul.f32 %v881, 1.442695
    %v883 = vpow.pop %v882
    %884 = vadd.xlane.f32.xlu0 %v883
    %v885 = vpop.xlane.xlu0 %884
    %v886 = vrcp.pop %v885
    %v887 = vmul.f32 %v885, %v886
    %v888 = vsub.f32 1.0, %v887
    %v889 = vmul.f32 %v886, %v888
    %v890 = vadd.f32 %v886, %v889
    %vm891 = vweird.f32 %v885
    %vm892 = vweird.f32 %v886
    %vm893 = vmor %vm891, %vm892
    %v894 = vsel %vm893, %v886, %v890
    %v895 = vand.u32 2147483647, %v885
    %vm896 = vcmp.eq.f32.partialorder %v895, 8.507059e+37
    %v897 = vand.u32 %v885, 2147483648
    %v898 = vor.u32 1.1754944e-38, %v897
    %v899 = vsel %vm896, %v898, %v894
    %v900 = vmul.f32 %v883, %v899
    %901 = vst [vmem:[#allocation13] sm:$0xff] %v900
    // Predicated region
    $region58: #{tpu_custom_call.1} parent=1 // pred_check
      _
    $region59: #{tpu_custom_call.1} parent=1 // pred_check_branch
      %903 = sbr.rel (0) target = $region61
    $region60: #{tpu_custom_call.1} parent=1 // pred_region
      %905 = vsyncadd [#allocation6], 0
      %s907 = sshll.u32 [#allocation13], 4
      %s908 = int_to_ptr.vmem [resolvable:$true] %s907
      %s909 = sshll.u32 %s9, 4
      %s910 = int_to_ptr.hbm [resolvable:$true] %s909
      %912 = dma.vmem_to_hbm [thread:$0]  %s908, 128, %s910, [#allocation6]
    $region61: #{tpu_custom_call.1} parent=1 // pred_fallthru
      _
    // Predicated region
    $region62: #{tpu_custom_call.1} parent=1 // pred_check
      _
    $region63: #{tpu_custom_call.1} parent=1 // pred_check_branch
      %914 = sbr.rel (0) target = $region65
    $region64: #{tpu_custom_call.1} parent=1 // pred_region
      %916 = dma.done [#allocation6], 128
    $region65: #{tpu_custom_call.1} parent=1 // pred_fallthru
      _
    %917 = vsyncpa [#allocation5], 1
    %918 = vsyncpa [#allocation8], 1
    %919 = vsyncpa [#allocation11], 1
    %920 = vsyncpa [#allocation6], 1

</llo_original>
